<compile_context>
chip_gen: v6e
topology: v6e:2x2x1
jax: 0.10.0
libtpu: 0.0.40
codegen_flags: <defaults>
</compile_context>

<pallas_src>
import math

import jax
import jax.numpy as jnp
import numpy as np
from jax import lax
from jax.experimental import pallas as pl
from jax.experimental.pallas import tpu as pltpu

LANE = 128


def eca_kernel_size(channels, gamma=2, b=1):
    t = int(abs(math.log(channels, 2) + b) / gamma)
    return t if t % 2 else t + 1


def _vmem_capacity_bytes():
    """Physical VMEM of the local chip (64 MiB on v7x, 128 MiB on v5e/v6e)."""
    try:
        info = pltpu.get_tpu_info()
        cap = getattr(info, "vmem_capacity_bytes", None)
        if cap:
            return int(cap)
    except Exception:
        pass
    return 64 << 20          # conservative default (v7x size)


def _unroll(n):
    return True if n <= 8 else 8


# ----------------------------- in-kernel ECA conv -----------------------------

def _conv_sigmoid_from_taps(pooled_col, w_ref, k, pad):
    """sigmoid(Conv1d_k(pooled)) computed in-kernel.

    pooled_col : (C, 1) f32 spatial sums (the 1/(H*W) mean is folded into w).
    w_ref      : (k,) f32 taps in SMEM.
    The (C, C) band is built on the fly from iota + scalar SMEM taps — no HBM
    load and no pipelined VMEM constant; the tiny (C,C)@(C,1) dot runs once per
    slab while the MXU is otherwise idle.
    """
    C = pooled_col.shape[0]
    ci = lax.broadcasted_iota(jnp.int32, (C, C), 0)     # output channel index
    cj = lax.broadcasted_iota(jnp.int32, (C, C), 1)     # input channel index
    band = jnp.zeros((C, C), jnp.float32)
    for j in range(k):                                   # k is a tiny static constant
        band = band + jnp.where(cj - ci == (j - pad), w_ref[j], 0.0)
    y = jnp.dot(band, pooled_col, preferred_element_type=jnp.float32)   # (C, 1)
    return jax.nn.sigmoid(y)


# ------------------------------- fused kernel ---------------------------------

def _make_fused_kernel(C, HW, k, pad, out_dtype):
    n_full = HW // LANE
    rem = HW - n_full * LANE

    def kernel(w_ref, x_ref, o_ref):
        # w_ref: (k,) f32 SMEM taps (pre-scaled by 1/(H*W))
        # x_ref: (1, C, HW) native dtype      o_ref: (1, C, HW) native dtype

        # ---- spatial sum: lane-wide VPU accumulation, one XLU reduce at the end
        def acc_body(s, acc):
            off = pl.multiple_of(s * LANE, LANE)
            return acc + x_ref[0, :, pl.ds(off, LANE)].astype(jnp.float32)

        acc = jnp.zeros((C, LANE), jnp.float32)
        if n_full > 0:
            acc = lax.fori_loop(0, n_full, acc_body, acc, unroll=_unroll(n_full))
        pooled = jnp.sum(acc, axis=1, keepdims=True)                    # (C, 1)
        if rem:
            pooled = pooled + jnp.sum(
                x_ref[0, :, n_full * LANE:].astype(jnp.float32),
                axis=1, keepdims=True)

        # ---- ECA conv + sigmoid on the pooled vector (f32 in-register)
        attn = _conv_sigmoid_from_taps(pooled, w_ref, k, pad)           # (C, 1)
        attn_b = jnp.broadcast_to(attn, (C, LANE))                      # hoisted broadcast

        # ---- scale the resident slab, chunked so no full-slab f32 temp is live
        def scale_body(s, carry):
            off = pl.multiple_of(s * LANE, LANE)
            chunk = x_ref[0, :, pl.ds(off, LANE)].astype(jnp.float32)
            o_ref[0, :, pl.ds(off, LANE)] = (chunk * attn_b).astype(out_dtype)
            return carry

        if n_full > 0:
            lax.fori_loop(0, n_full, scale_body, 0, unroll=_unroll(n_full))
        if rem:
            tail = x_ref[0, :, n_full * LANE:].astype(jnp.float32)
            o_ref[0, :, n_full * LANE:] = (tail * attn).astype(out_dtype)

    return kernel


def _eca_fused(x3, w_scaled, k, pad, vmem_limit):
    N, C, HW = x3.shape
    kernel = _make_fused_kernel(C, HW, k, pad, x3.dtype)
    return pl.pallas_call(
        kernel,
        out_shape=jax.ShapeDtypeStruct((N, C, HW), x3.dtype),
        grid=(N,),
        in_specs=[
            pl.BlockSpec(memory_space=pltpu.MemorySpace.SMEM),   # (k,) taps
            pl.BlockSpec((1, C, HW), lambda b: (b, 0, 0)),
        ],
        out_specs=pl.BlockSpec((1, C, HW), lambda b: (b, 0, 0)),
        compiler_params=pltpu.CompilerParams(
            dimension_semantics=("parallel",),
            vmem_limit_bytes=vmem_limit),
    )(w_scaled, x3)


# ------------------------- two-pass fallback kernels ---------------------------

def _make_pool_kernel(C, hw_tile, HW):
    chunked = (hw_tile % LANE == 0)
    need_mask = chunked and (HW % hw_tile != 0)
    n_sub = hw_tile // LANE

    def kernel(x_ref, pool_ref, acc_ref):
        # x_ref: (1, C, hw_tile) native dtype   pool_ref: (1, C, 1) f32 sums
        # acc_ref: (C, 128) f32 scratch — lane-wide running sum (VPU adds only)
        t = pl.program_id(1)

        @pl.when(t == 0)
        def _init():
            acc_ref[...] = jnp.zeros_like(acc_ref)

        if chunked:
            if need_mask:
                base = t * hw_tile
                lane_idx = lax.broadcasted_iota(jnp.int32, (C, LANE), 1)

            def body(s, acc):
                off = pl.multiple_of(s * LANE, LANE)
                chunk = x_ref[0, :, pl.ds(off, LANE)].astype(jnp.float32)
                if need_mask:
                    chunk = jnp.where(base + off + lane_idx < HW, chunk, 0.0)
                return acc + chunk

            acc_ref[...] += lax.fori_loop(
                0, n_sub, body, jnp.zeros((C, LANE), jnp.float32),
                unroll=_unroll(n_sub))
        else:
            # Tiny single-tile case (hw_tile == HW, possibly < 128): direct reduce.
            acc_ref[:, 0:1] += jnp.sum(x_ref[0].astype(jnp.float32),
                                       axis=1, keepdims=True)

        @pl.when(t == pl.num_programs(1) - 1)
        def _finalize():
            pool_ref[0] = jnp.sum(acc_ref[...], axis=1, keepdims=True)

    return kernel


def _eca_pool_sums(x3, hw_tile, vmem_limit):
    N, C, HW = x3.shape
    n_tiles = pl.cdiv(HW, hw_tile)
    kernel = _make_pool_kernel(C, hw_tile, HW)
    return pl.pallas_call(
        kernel,
        out_shape=jax.ShapeDtypeStruct((N, C, 1), jnp.float32),
        grid=(N, n_tiles),
        in_specs=[pl.BlockSpec((1, C, hw_tile), lambda b, t: (b, 0, t))],
        out_specs=pl.BlockSpec((1, C, 1), lambda b, t: (b, 0, 0)),
        scratch_shapes=[pltpu.VMEM((C, LANE), jnp.float32)],
        compiler_params=pltpu.CompilerParams(
            dimension_semantics=("parallel", "arbitrary"),
            vmem_limit_bytes=vmem_limit),
    )(x3)


def _scale_kernel(x_ref, attn_ref, o_ref):
    # x_ref: (1, C, hw_tile) native   attn_ref: (1, C, 1) f32   o_ref: like x
    o_ref[...] = (x_ref[...].astype(jnp.float32) * attn_ref[...]).astype(o_ref.dtype)


def _eca_scale(x3, attn, hw_tile, vmem_limit):
    N, C, HW = x3.shape
    n_tiles = pl.cdiv(HW, hw_tile)
    return pl.pallas_call(
        _scale_kernel,
        out_shape=jax.ShapeDtypeStruct((N, C, HW), x3.dtype),
        grid=(N, n_tiles),
        in_specs=[
            pl.BlockSpec((1, C, hw_tile), lambda b, t: (b, 0, t)),
            pl.BlockSpec((1, C, 1), lambda b, t: (b, 0, 0)),
        ],
        out_specs=pl.BlockSpec((1, C, hw_tile), lambda b, t: (b, 0, t)),
        compiler_params=pltpu.CompilerParams(
            dimension_semantics=("parallel", "parallel"),
            vmem_limit_bytes=vmem_limit),
    )(x3, attn)


def _pick_hw_tile(hw, c, itemsize, budget_bytes):
    """Pick an H*W tile for the fallback path.

    Prefers an exact 128-multiple divisor of hw under the byte budget; when no
    such divisor exists, returns a 128-multiple tile and the pool kernel masks
    the tail (grid uses cdiv), so awkward spatial sizes never force one giant
    block.
    """
    if hw <= LANE:
        return hw
    max_tile = max(LANE, (budget_bytes // (itemsize * c)) // LANE * LANE)
    if hw <= max_tile:
        return hw
    t = min(max_tile, (hw // LANE) * LANE)
    while t >= LANE:
        if hw % t == 0:
            return t
        t -= LANE
    return max_tile


# ---------------------------------- wrapper ------------------------------------

def eca_forward(x_nchw, conv_w, *, force_two_pass=False, two_pass_block_budget=None):
    """ECABlock forward. x_nchw: (N, C, H, W) float dtype; conv_w: (k,) Conv1d taps."""
    N, C, H, W = x_nchw.shape
    HW = H * W
    k = int(conv_w.shape[0])
    pad = (k - 1) // 2

    x3 = x_nchw.reshape(N, C, HW)                    # native dtype — no f32 upcast
    itemsize = jnp.dtype(x3.dtype).itemsize
    w32 = conv_w.astype(jnp.float32)

    vmem = _vmem_capacity_bytes()
    slab_bytes = C * HW * itemsize
    # in/out slabs are double-buffered (4x slab) + in-kernel band/acc/chunk temps
    misc_bytes = 4 * C * C + 4 * C * LANE + (2 << 20)
    fused_fits = (4 * slab_bytes + misc_bytes) <= (3 * vmem) // 4

    if fused_fits and not force_two_pass:
        # Fused single-pass: 1 read + 1 write of x.
        vmem_limit = int(min(0.8 * vmem,
                             max(4 * slab_bytes + misc_bytes + (2 << 20), 32 << 20)))
        out3 = _eca_fused(x3, w32 * (1.0 / HW), k, pad, vmem_limit)
    else:
        # Two-pass fallback: pool -> (tiny conv+sigmoid in plain JAX) -> scale.
        budget = two_pass_block_budget
        if budget is None:
            budget = max(LANE * C * itemsize, min(4 << 20, vmem // 24))
        hw_tile = _pick_hw_tile(HW, C, itemsize, budget)
        blk_bytes = C * hw_tile * itemsize
        vmem_limit = int(min(0.6 * vmem, max(12 * blk_bytes, 32 << 20)))

        pooled = _eca_pool_sums(x3, hw_tile, vmem_limit)          # (N, C, 1) f32 sums
        p = pooled[:, :, 0] * (1.0 / HW)                          # (N, C) means
        pp = jnp.pad(p, ((0, 0), (pad, pad)))
        y = sum(w32[j] * pp[:, j:j + C] for j in range(k))
        attn = jax.nn.sigmoid(y)[:, :, None]                      # (N, C, 1) f32
        out3 = _eca_scale(x3, attn, hw_tile, vmem_limit)

    return out3.reshape(N, C, H, W)


# --------------------------------- reference ------------------------------------

def eca_reference(x, conv_w):
    k = conv_w.shape[0]
    pad = (k - 1) // 2
    pooled = jnp.mean(x, axis=(2, 3))                             # (N, C)
    pp = jnp.pad(pooled, ((0, 0), (pad, pad)))
    y = sum(conv_w[j] * pp[:, j:j + x.shape[1]] for j in range(k))
    attn = jax.nn.sigmoid(y)
    return x * attn[:, :, None, None]


# ----------------------------------- main ---------------------------------------

if __name__ == "__main__":
    key = jax.random.PRNGKey(0)

    cases = [
        # (shape,            dtype,         forward kwargs,                          tol)
        ((2, 32, 16, 16), jnp.float32, {},                                           1e-5),
        ((2, 4, 16, 16),  jnp.float32, {},                                           1e-5),  # k == 1
        ((2, 32, 16, 16), jnp.bfloat16, {},                                          3e-2),  # native bf16 streaming
        ((2, 32, 18, 18), jnp.float32,
         dict(force_two_pass=True, two_pass_block_budget=32 * LANE * 4),             1e-5),  # fallback + masked tail
    ]

    for (N, C, H, W), dtype, kwargs, tol in cases:
        key, kx, kwt = jax.random.split(key, 3)
        x = jax.random.normal(kx, (N, C, H, W), jnp.float32).astype(dtype)
        k = eca_kernel_size(C)
        conv_w = jax.random.normal(kwt, (k,), jnp.float32) / math.sqrt(k)

        out = jax.block_until_ready(eca_forward(x, conv_w, **kwargs))
        assert out.shape == (N, C, H, W)
        assert out.dtype == dtype

        ref = eca_reference(x.astype(jnp.float32), conv_w)
        np.testing.assert_allclose(np.asarray(out.astype(jnp.float32)),
                                   np.asarray(ref), rtol=tol, atol=tol)

    print("KERNEL_OK")
</pallas_src>

<mosaic_0001>
module attributes {stable_mosaic.version = 11 : i64} {
  func.func @kernel(%arg0: i32, %arg1: memref<3xf32, #tpu.memory_space<smem>>, %arg2: memref<1x32x256xf32, #tpu.memory_space<vmem>>, %arg3: memref<1x32x256xf32, #tpu.memory_space<vmem>>) attributes {dimension_semantics = [#tpu.dimension_semantics<parallel>], iteration_bounds = array<i64: 2>, scalar_prefetch = 0 : i64, scratch_operands = 0 : i64, tpu.core_type = #tpu.core_type<tc>, window_params = [{transform_indices = @transform_0, window_bounds = array<i64: 3>}, {transform_indices = @transform_1, window_bounds = array<i64: 1, 32, 256>}, {transform_indices = @transform_2, window_bounds = array<i64: 1, 32, 256>}]} {
    %cst = arith.constant 0.000000e+00 : f32
    %0 = vector.broadcast %cst : f32 to vector<32x128xf32>
    %c0_i32 = arith.constant 0 : i32
    %c128_i32 = arith.constant 128 : i32
    %1 = arith.muli %c0_i32, %c128_i32 : i32
    %2 = tpu.assume_multiple %1, 128 : i32
    %c0 = arith.constant 0 : index
    %c0_0 = arith.constant 0 : index
    %3 = arith.index_cast %2 : i32 to index
    %4 = vector.load %arg2[%c0, %c0_0, %3] : memref<1x32x256xf32, #tpu.memory_space<vmem>>, vector<1x32x128xf32>
    %5 = vector.shape_cast %4 : vector<1x32x128xf32> to vector<32x128xf32>
    %6 = arith.addf %0, %5 : vector<32x128xf32>
    %c1_i32 = arith.constant 1 : i32
    %c128_i32_1 = arith.constant 128 : i32
    %7 = arith.muli %c1_i32, %c128_i32_1 : i32
    %8 = tpu.assume_multiple %7, 128 : i32
    %c0_2 = arith.constant 0 : index
    %c0_3 = arith.constant 0 : index
    %9 = arith.index_cast %8 : i32 to index
    %10 = vector.load %arg2[%c0_2, %c0_3, %9] : memref<1x32x256xf32, #tpu.memory_space<vmem>>, vector<1x32x128xf32>
    %11 = vector.shape_cast %10 : vector<1x32x128xf32> to vector<32x128xf32>
    %12 = arith.addf %6, %11 : vector<32x128xf32>
    %c2_i32 = arith.constant 2 : i32
    %cst_4 = arith.constant dense<0.000000e+00> : vector<32xf32>
    %13 = vector.multi_reduction <add>, %12, %cst_4 [1] : vector<32x128xf32> to vector<32xf32>
    %14 = vector.shape_cast %13 : vector<32xf32> to vector<32x1xf32>
    %15 = tpu.iota {dimensions = array<i32: 0>} : vector<32x32xi32>
    %16 = tpu.iota {dimensions = array<i32: 1>} : vector<32x32xi32>
    %cst_5 = arith.constant 0.000000e+00 : f32
    %17 = vector.broadcast %cst_5 : f32 to vector<32x32xf32>
    %18 = arith.subi %16, %15 : vector<32x32xi32>
    %c-1_i32 = arith.constant -1 : i32
    %19 = vector.broadcast %c-1_i32 : i32 to vector<32x32xi32>
    %20 = arith.cmpi eq, %18, %19 : vector<32x32xi32>
    %c0_6 = arith.constant 0 : index
    %21 = memref.load %arg1[%c0_6] : memref<3xf32, #tpu.memory_space<smem>>
    %cst_7 = arith.constant 0.000000e+00 : f32
    %22 = vector.broadcast %21 : f32 to vector<32x32xf32>
    %23 = vector.broadcast %cst_7 : f32 to vector<32x32xf32>
    %24 = arith.select %20, %22, %23 : vector<32x32xi1>, vector<32x32xf32>
    %25 = arith.addf %17, %24 : vector<32x32xf32>
    %26 = arith.subi %16, %15 : vector<32x32xi32>
    %c0_i32_8 = arith.constant 0 : i32
    %27 = vector.broadcast %c0_i32_8 : i32 to vector<32x32xi32>
    %28 = arith.cmpi eq, %26, %27 : vector<32x32xi32>
    %c1 = arith.constant 1 : index
    %29 = memref.load %arg1[%c1] : memref<3xf32, #tpu.memory_space<smem>>
    %cst_9 = arith.constant 0.000000e+00 : f32
    %30 = vector.broadcast %29 : f32 to vector<32x32xf32>
    %31 = vector.broadcast %cst_9 : f32 to vector<32x32xf32>
    %32 = arith.select %28, %30, %31 : vector<32x32xi1>, vector<32x32xf32>
    %33 = arith.addf %25, %32 : vector<32x32xf32>
    %34 = arith.subi %16, %15 : vector<32x32xi32>
    %c1_i32_10 = arith.constant 1 : i32
    %35 = vector.broadcast %c1_i32_10 : i32 to vector<32x32xi32>
    %36 = arith.cmpi eq, %34, %35 : vector<32x32xi32>
    %c2 = arith.constant 2 : index
    %37 = memref.load %arg1[%c2] : memref<3xf32, #tpu.memory_space<smem>>
    %cst_11 = arith.constant 0.000000e+00 : f32
    %38 = vector.broadcast %37 : f32 to vector<32x32xf32>
    %39 = vector.broadcast %cst_11 : f32 to vector<32x32xf32>
    %40 = arith.select %36, %38, %39 : vector<32x32xi1>, vector<32x32xf32>
    %41 = arith.addf %33, %40 : vector<32x32xf32>
    %cst_12 = arith.constant dense<0.000000e+00> : vector<32x1xf32>
    %42 = tpu.matmul %41, %14, %cst_12 {dimension_numbers = #tpu.dot_dimension_numbers<[1], [0], [0], [1], [0, 0, 1, 1], [], []>} : vector<32x32xf32>, vector<32x1xf32>, vector<32x1xf32> -> vector<32x1xf32>
    %43 = arith.negf %42 : vector<32x1xf32>
    %44 = math.exp %43 : vector<32x1xf32>
    %cst_13 = arith.constant 1.000000e+00 : f32
    %45 = vector.broadcast %cst_13 : f32 to vector<32x1xf32>
    %46 = arith.addf %45, %44 : vector<32x1xf32>
    %47 = arith.divf %45, %46 : vector<32x1xf32>
    %48 = vector.shape_cast %47 : vector<32x1xf32> to vector<32x1xf32>
    %49 = vector.broadcast %48 : vector<32x1xf32> to vector<32x128xf32>
    %c0_i32_14 = arith.constant 0 : i32
    %c128_i32_15 = arith.constant 128 : i32
    %50 = arith.muli %c0_i32_14, %c128_i32_15 : i32
    %51 = tpu.assume_multiple %50, 128 : i32
    %c0_16 = arith.constant 0 : index
    %c0_17 = arith.constant 0 : index
    %52 = arith.index_cast %51 : i32 to index
    %53 = vector.load %arg2[%c0_16, %c0_17, %52] : memref<1x32x256xf32, #tpu.memory_space<vmem>>, vector<1x32x128xf32>
    %54 = vector.shape_cast %53 : vector<1x32x128xf32> to vector<32x128xf32>
    %55 = arith.mulf %54, %49 : vector<32x128xf32>
    %c0_18 = arith.constant 0 : index
    %c0_19 = arith.constant 0 : index
    %56 = arith.index_cast %51 : i32 to index
    %57 = vector.load %arg3[%c0_18, %c0_19, %56] : memref<1x32x256xf32, #tpu.memory_space<vmem>>, vector<1x32x128xf32>
    %58 = vector.shape_cast %57 : vector<1x32x128xf32> to vector<32x128xf32>
    %59 = vector.shape_cast %55 : vector<32x128xf32> to vector<1x32x128xf32>
    tpu.vector_store %arg3[%c0_18, %c0_19, %56], %59 {strides = array<i32>} : memref<1x32x256xf32, #tpu.memory_space<vmem>>, vector<1x32x128xf32>,
    %c1_i32_20 = arith.constant 1 : i32
    %c128_i32_21 = arith.constant 128 : i32
    %60 = arith.muli %c1_i32_20, %c128_i32_21 : i32
    %61 = tpu.assume_multiple %60, 128 : i32
    %c0_22 = arith.constant 0 : index
    %c0_23 = arith.constant 0 : index
    %62 = arith.index_cast %61 : i32 to index
    %63 = vector.load %arg2[%c0_22, %c0_23, %62] : memref<1x32x256xf32, #tpu.memory_space<vmem>>, vector<1x32x128xf32>
    %64 = vector.shape_cast %63 : vector<1x32x128xf32> to vector<32x128xf32>
    %65 = arith.mulf %64, %49 : vector<32x128xf32>
    %c0_24 = arith.constant 0 : index
    %c0_25 = arith.constant 0 : index
    %66 = arith.index_cast %61 : i32 to index
    %67 = vector.load %arg3[%c0_24, %c0_25, %66] : memref<1x32x256xf32, #tpu.memory_space<vmem>>, vector<1x32x128xf32>
    %68 = vector.shape_cast %67 : vector<1x32x128xf32> to vector<32x128xf32>
    %69 = vector.shape_cast %65 : vector<32x128xf32> to vector<1x32x128xf32>
    tpu.vector_store %arg3[%c0_24, %c0_25, %66], %69 {strides = array<i32>} : memref<1x32x256xf32, #tpu.memory_space<vmem>>, vector<1x32x128xf32>,
    %c2_i32_26 = arith.constant 2 : i32
    return
  }
  func.func @transform_0(%arg0: i32) -> i32 {
    %c0_i32 = arith.constant 0 : i32
    %c0_i32_0 = arith.constant 0 : i32
    return %c0_i32 : i32
  }
  func.func @transform_1(%arg0: i32) -> (i32, i32, i32) {
    %c0_i32 = arith.constant 0 : i32
    %c0_i32_0 = arith.constant 0 : i32
    %c0_i32_1 = arith.constant 0 : i32
    return %arg0, %c0_i32, %c0_i32_0 : i32, i32, i32
  }
  func.func @transform_2(%arg0: i32) -> (i32, i32, i32) {
    %c0_i32 = arith.constant 0 : i32
    %c0_i32_0 = arith.constant 0 : i32
    %c0_i32_1 = arith.constant 0 : i32
    return %arg0, %c0_i32, %c0_i32_0 : i32, i32, i32
  }
}

</mosaic_0001>

<llo_original>
// kernel: tpu_custom_call.1
$region0: #{tpu_custom_call.1}
  #allocation0 [shape = 'u32[]', space=smem, size = 0x4, offset = 0x4, fixed_abs, tag = 'smem constant byte address 0x4 - core index']
  #allocation1 [shape = 'u32[144,128]{1,0:T(1,128)}', space=vmem, size = 0x12000, scoped, tag = 'internal scratch']
  %s0 = inlined_call_operand.hbm [shape: f32[3], index: 0, kind: input, shape index: {}]
  %s1 = inlined_call_operand.hbm [shape: f32[2,32,256], index: 1, kind: input, shape index: {}]
  %s2 = inlined_call_operand.hbm [shape: f32[2,32,256], index: 2, kind: output, shape index: {}]
  %s3 = sld [smem:[#allocation0]]
  $region49: #{tpu_custom_call.1} parent=0
    _
  %s5 = ssub.s32 1, %s3
  %s6 = scalar_select 0, %s5, %s3
  $region1: #{tpu_custom_call.1} parent=0
    #allocation2 [shape = 'u8[512]{0}', space=smem, size = 0x200, scoped, tag = 'input window, operand 0, single buffered']
    #allocation3 [shape = 's32[2]{0}', space=sflag, size = 0x8, scoped, tag = 'scoped memory for tpu_custom_call.1']
    #allocation4 [shape = 's32[2]{0}', space=sflag, size = 0x8, scoped, tag = 'scoped memory for tpu_custom_call.1']
    #allocation5 [shape = 's32[2]{0}', space=sflag, size = 0x8, scoped, tag = 'scoped memory for tpu_custom_call.1']
    #allocation6 [shape = 'u8[65536]{0}', space=vmem, size = 0x10000, scoped, tag = 'input window, operand 1']
    #allocation7 [shape = 'u8[65536]{0}', space=vmem, size = 0x10000, scoped, tag = 'output window, operand 0']
    %7 = vsyncpa [#allocation5], 0
    %8 = vsyncpa [#allocation3], 0
    %s9 = scalar_lea.sflag [#allocation3], 1
    %10 = vsyncpa %s9, 0
    %11 = vsyncpa [#allocation4], 0
    %s12 = scalar_lea.sflag [#allocation4], 1
    %13 = vsyncpa %s12, 0
    loop: start=0, step=1, limit=4
    $region2: #{tpu_custom_call.1} parent=1 // loop_pre_header
      _
    $region3: #{tpu_custom_call.1} parent=1 // loop_header
      %s15 = sphi 0, %s19
      %p16 = scmp.ge.s32.totalorder %s15, 4
      %s23 = sphi 0, %s23
      %s25 = sphi 0, %s23
      %s26 = sphi 0, %s25
      %s40 = sphi 0, %s26
      %s46 = sphi 0, %s48
      %s49 = sphi 0, %s46
      %s50 = sphi 0, %s49
      %s66 = sphi 0, %s50
      %s72 = sphi 0, %s74
      %s75 = sphi 0, %s72
      %s76 = sphi 0, %s75
      %s92 = sphi 0, %s76
    $region4: #{tpu_custom_call.1} parent=1 // loop_header_branch
      %18 = sbr.rel (%p16) target = $region8
    $region5: #{tpu_custom_call.1} parent=1 // loop_body
      %s20 = ssub.s32 %s15, 1
      %s21 = ssub.s32 %s15, 2
      %s22 = sadd.s32 %s15, 1
      %s24 = sadd.s32 %s23, 1
      %p27 = scmp.eq.s32.totalorder %s15, 1
      %p28 = scmp.ne.s32.totalorder %s23, %s25
      %p29 = scmp.eq.s32.totalorder %s15, 0
      %p30 = por %p28, %p29
      %p31 = scmp.ne.s32.totalorder %s23, %s25
      %p32 = scmp.eq.s32.totalorder %s20, 1
      %p33 = por %p31, %p32
      %p34 = scmp.ne.s32.totalorder %s25, %s26
      %p35 = scmp.eq.s32.totalorder %s20, 0
      %p36 = por %p34, %p35
      %p37 = scmp.ne.s32.totalorder %s25, %s26
      %p38 = scmp.eq.s32.totalorder %s21, 1
      %p39 = por %p37, %p38
      %p41 = scmp.ne.s32.totalorder %s26, %s40
      %p42 = scmp.eq.s32.totalorder %s21, 0
      %p43 = por %p41, %p42
      %s44 = ssub.s32 %s15, %s22
      %p45 = scmp.eq.s32.totalorder %s44, 0
      %s47 = sadd.s32 %s46, 1
      %s48 = scalar_select %p45, %s46, %s47
      %p51 = pneg %p45
      %p52 = scmp.eq.s32.totalorder %s15, 1
      %p53 = por %p51, %p52
      %p54 = scmp.ne.s32.totalorder %s46, %s49
      %p55 = scmp.eq.s32.totalorder %s15, 0
      %p56 = por %p54, %p55
      %p57 = scmp.ne.s32.totalorder %s46, %s49
      %p58 = scmp.eq.s32.totalorder %s20, 1
      %p59 = por %p57, %p58
      %p60 = scmp.ne.s32.totalorder %s49, %s50
      %p61 = scmp.eq.s32.totalorder %s20, 0
      %p62 = por %p60, %p61
      %p63 = scmp.ne.s32.totalorder %s49, %s50
      %p64 = scmp.eq.s32.totalorder %s21, 1
      %p65 = por %p63, %p64
      %p67 = scmp.ne.s32.totalorder %s50, %s66
      %p68 = scmp.eq.s32.totalorder %s21, 0
      %p69 = por %p67, %p68
      %s70 = ssub.s32 %s15, %s22
      %p71 = scmp.eq.s32.totalorder %s70, 0
      %s73 = sadd.s32 %s72, 1
      %s74 = scalar_select %p71, %s72, %s73
      %p77 = pneg %p71
      %p78 = scmp.eq.s32.totalorder %s15, 1
      %p79 = por %p77, %p78
      %p80 = scmp.ne.s32.totalorder %s72, %s75
      %p81 = scmp.eq.s32.totalorder %s15, 0
      %p82 = por %p80, %p81
      %p83 = scmp.ne.s32.totalorder %s72, %s75
      %p84 = scmp.eq.s32.totalorder %s20, 1
      %p85 = por %p83, %p84
      %p86 = scmp.ne.s32.totalorder %s75, %s76
      %p87 = scmp.eq.s32.totalorder %s20, 0
      %p88 = por %p86, %p87
      %p89 = scmp.ne.s32.totalorder %s75, %s76
      %p90 = scmp.eq.s32.totalorder %s21, 1
      %p91 = por %p89, %p90
      %p93 = scmp.ne.s32.totalorder %s76, %s92
      %p94 = scmp.eq.s32.totalorder %s21, 0
      %p95 = por %p93, %p94
      %p96 = scmp.le.s32.totalorder 1, %s15
      %p97 = scmp.lt.s32.totalorder %s15, 3
      %p98 = pnand %p96, %p97
      %p99 = pneg %p98
      // Predicated region
      $region9: #{tpu_custom_call.1} parent=5 // pred_check
        _
      $region10: #{tpu_custom_call.1} parent=5 // pred_check_branch
        %101 = sbr.rel (%p98) target = $region12
      $region11: #{tpu_custom_call.1} parent=5 // pred_region
        %s102 = ssub.s32 %s15, 1
        // Predicated region
        $region13: #{tpu_custom_call.1} parent=11 // pred_check
          %p103 = pneg %p36
        $region14: #{tpu_custom_call.1} parent=11 // pred_check_branch
          %105 = sbr.rel (%p103) target = $region16
        $region15: #{tpu_custom_call.1} parent=11 // pred_region
          %s107 = ssub.s32 16, 16
          %108 = vsyncadd [#allocation5], %s107
          %111 = dma.hbm_to_smem %s0, 16, [#allocation2], [#allocation5]
        $region16: #{tpu_custom_call.1} parent=11 // pred_fallthru
          _
      $region12: #{tpu_custom_call.1} parent=5 // pred_fallthru
        _
      %p112 = scmp.lt.s32.totalorder %s15, 2
      // Predicated region
      $region17: #{tpu_custom_call.1} parent=5 // pred_check
        %p113 = pneg %p112
      $region18: #{tpu_custom_call.1} parent=5 // pred_check_branch
        %115 = sbr.rel (%p113) target = $region20
      $region19: #{tpu_custom_call.1} parent=5 // pred_region
        // Predicated region
        $region21: #{tpu_custom_call.1} parent=19 // pred_check
          %p116 = pneg %p56
        $region22: #{tpu_custom_call.1} parent=19 // pred_check_branch
          %118 = sbr.rel (%p116) target = $region24
        $region23: #{tpu_custom_call.1} parent=19 // pred_region
          %s119 = sand.u32 %s46, 1
          %s120 = scalar_lea.sflag [#allocation3], %s119
          %s121 = sand.u32 %s46, 1
          %s122 = smul.addr %s121, 64
          %s123 = scalar_lea.vmem [#allocation6], %s122
          %s125 = ssub.s32 1024, 1024
          %126 = vsyncadd %s120, %s125
          %s127 = smul.addr %s15, 8
          %s128 = smul.addr %s127, 128
          %s129 = scalar_lea.hbm %s1, %s128
          %s130 = sshll.u32 %s123, 4
          %s131 = int_to_ptr.vmem [resolvable:$true] %s130
          %136 = dma.hbm_to_vmem [thread:$0]  %s129, 1024, %s131, %s120, 256, 256, 16
        $region24: #{tpu_custom_call.1} parent=19 // pred_fallthru
          _
      $region20: #{tpu_custom_call.1} parent=5 // pred_fallthru
        _
      %p137 = scmp.le.s32.totalorder 1, %s15
      %p138 = scmp.lt.s32.totalorder %s15, 3
      %p139 = pnand %p137, %p138
      %p140 = pneg %p139
      // Predicated region
      $region25: #{tpu_custom_call.1} parent=5 // pred_check
        _
      $region26: #{tpu_custom_call.1} parent=5 // pred_check_branch
        %142 = sbr.rel (%p139) target = $region28
      $region27: #{tpu_custom_call.1} parent=5 // pred_region
        %s143 = ssub.s32 %s15, 1
        // Predicated region
        $region29: #{tpu_custom_call.1} parent=27 // pred_check
          %p144 = pneg %p36
        $region30: #{tpu_custom_call.1} parent=27 // pred_check_branch
          %146 = sbr.rel (%p144) target = $region32
        $region31: #{tpu_custom_call.1} parent=27 // pred_region
          %147 = dma.done [#allocation5], 16
        $region32: #{tpu_custom_call.1} parent=27 // pred_fallthru
          _
        %s148 = sand.u32 %s49, 1
        %s149 = scalar_lea.sflag [#allocation3], %s148
        %s150 = sand.u32 %s49, 1
        %s151 = smul.addr %s150, 64
        %s152 = scalar_lea.vmem [#allocation6], %s151
        // Predicated region
        $region33: #{tpu_custom_call.1} parent=27 // pred_check
          %p153 = pneg %p62
        $region34: #{tpu_custom_call.1} parent=27 // pred_check_branch
          %155 = sbr.rel (%p153) target = $region36
        $region35: #{tpu_custom_call.1} parent=27 // pred_region
          %156 = dma.done %s149, 1024
        $region36: #{tpu_custom_call.1} parent=27 // pred_fallthru
          _
        %157 = sfence
        %p158 = pneg %p36
        %p159 = pneg %p33
        %s160 = sand.u32 %s49, 1
        %s161 = scalar_lea.sflag [#allocation3], %s160
        %s162 = sand.u32 %s49, 1
        %s163 = smul.addr %s162, 64
        %s164 = scalar_lea.vmem [#allocation6], %s163
        %p165 = pneg %p62
        %p166 = pneg %p59
        %p167 = pneg %p88
        %p168 = pneg %p85
        %s169 = sand.u32 %s75, 1
        %s170 = scalar_lea.sflag [#allocation4], %s169
        %s171 = sand.u32 %s75, 1
        %s172 = smul.addr %s171, 64
        %s173 = scalar_lea.vmem [#allocation7], %s172
        %v174 = vld [vmem:[%s152] sm:$0xff]
        %v175 = vld [vmem:[%s152 + $0x10] sm:$0xff]
        %v176 = vld [vmem:[%s152 + $0x20] sm:$0xff]
        %v177 = vld [vmem:[%s152 + $0x30] sm:$0xff]
        %v178 = vadd.f32 %v174, 0.0
        %v179 = vadd.f32 %v175, 0.0
        %v180 = vadd.f32 %v176, 0.0
        %v181 = vadd.f32 %v177, 0.0
        %s182 = scalar_lea.vmem %s152, 8 [#allocation6]
        %v183 = vld [vmem:[%s182] sm:$0xff]
        %v184 = vld [vmem:[%s182 + $0x10] sm:$0xff]
        %v185 = vld [vmem:[%s182 + $0x20] sm:$0xff]
        %v186 = vld [vmem:[%s182 + $0x30] sm:$0xff]
        %v187 = vadd.f32 %v178, %v183
        %v188 = vadd.f32 %v179, %v184
        %v189 = vadd.f32 %v180, %v185
        %v190 = vadd.f32 %v181, %v186
        %191 = vadd.xlane.f32.xlu0 %v187
        %v192 = vpop.xlane.xlu0 %191
        %193 = vadd.xlane.f32.xlu0 %v188
        %v194 = vpop.xlane.xlu0 %193
        %195 = vadd.xlane.f32.xlu0 %v189
        %v196 = vpop.xlane.xlu0 %195
        %197 = vadd.xlane.f32.xlu0 %v190
        %v198 = vpop.xlane.xlu0 %197
        %v199 = vlaneseq
        %v200 = vshrl.u32 %v199, 7
        %v201 = vadd.s32 %v200, 8
        %v202 = vadd.s32 %v200, 16
        %v203 = vadd.s32 %v200, 24
        %v204 = vlaneseq
        %v205 = vand.u32 %v204, 127
        %v206 = vsub.s32 %v205, %v200
        %v207 = vsub.s32 %v205, %v201
        %v208 = vsub.s32 %v205, %v202
        %v209 = vsub.s32 %v205, %v203
        %vm210 = vcmp.eq.s32.totalorder %v206, 4294967295
        %vm211 = vcmp.eq.s32.totalorder %v207, 4294967295
        %vm212 = vcmp.eq.s32.totalorder %v208, 4294967295
        %vm213 = vcmp.eq.s32.totalorder %v209, 4294967295
        %s214 = sld [smem:[#allocation2]]
        %v215 = vstv %s214
        %v216 = vsel %vm210, %v215, 0.0
        %v217 = vsel %vm211, %v215, 0.0
        %v218 = vsel %vm212, %v215, 0.0
        %v219 = vsel %vm213, %v215, 0.0
        %v220 = vadd.f32 %v216, 0.0
        %v221 = vadd.f32 %v217, 0.0
        %v222 = vadd.f32 %v218, 0.0
        %v223 = vadd.f32 %v219, 0.0
        %vm224 = vcmp.eq.s32.totalorder %v206, 0
        %vm225 = vcmp.eq.s32.totalorder %v207, 0
        %vm226 = vcmp.eq.s32.totalorder %v208, 0
        %vm227 = vcmp.eq.s32.totalorder %v209, 0
        %s228 = sld [smem:[#allocation2 + $0x1]]
        %v229 = vstv %s228
        %v230 = vsel %vm224, %v229, 0.0
        %v231 = vsel %vm225, %v229, 0.0
        %v232 = vsel %vm226, %v229, 0.0
        %v233 = vsel %vm227, %v229, 0.0
        %v234 = vadd.f32 %v220, %v230
        %v235 = vadd.f32 %v221, %v231
        %v236 = vadd.f32 %v222, %v232
        %v237 = vadd.f32 %v223, %v233
        %vm238 = vcmp.eq.s32.totalorder %v206, 1
        %vm239 = vcmp.eq.s32.totalorder %v207, 1
        %vm240 = vcmp.eq.s32.totalorder %v208, 1
        %vm241 = vcmp.eq.s32.totalorder %v209, 1
        %s242 = sld [smem:[#allocation2 + $0x2]]
        %v243 = vstv %s242
        %v244 = vsel %vm238, %v243, 0.0
        %v245 = vsel %vm239, %v243, 0.0
        %v246 = vsel %vm240, %v243, 0.0
        %v247 = vsel %vm241, %v243, 0.0
        %v248 = vadd.f32 %v234, %v244
        %v249 = vadd.f32 %v235, %v245
        %v250 = vadd.f32 %v236, %v246
        %v251 = vadd.f32 %v237, %v247
        %vm252 = vcmask 261120
        %v254 = vsel %vm252, %v248, 0
        %v257 = vsel %vm252, %v249, 0
        %v260 = vsel %vm252, %v250, 0
        %v263 = vsel %vm252, %v251, 0
        %265 = vmatprep.subr.mxu0 0.0
        %266 = vmatpush1.msra.mxu0 0.0
        %267 = vmatprep.subr.mxu0 0.0
        %268 = vmatpush1.msra.mxu0 0.0
        %269 = vmatprep.subr.mxu0 0.0
        %270 = vmatpush1.msra.mxu0 0.0
        %271 = vmatprep.subr.mxu0 0.0
        %272 = vmatpush1.msra.mxu0 0.0
        %273 = vmatprep.subr.mxu0 0.0
        %274 = vmatpush1.msra.mxu0 0.0
        %275 = vmatprep.subr.mxu0 0.0
        %276 = vmatpush1.msra.mxu0 0.0
        %277 = vmatprep.subr.mxu0 0.0
        %278 = vmatpush1.msra.mxu0 0.0
        %279 = vmatprep.subr.mxu0 0.0
        %280 = vmatpush1.msra.mxu0 0.0
        %281 = vmatprep.subr.mxu0 0.0
        %282 = vmatpush1.msra.mxu0 0.0
        %283 = vmatprep.subr.mxu0 0.0
        %284 = vmatpush1.msra.mxu0 0.0
        %285 = vmatprep.subr.mxu0 0.0
        %286 = vmatpush1.msra.mxu0 0.0
        %287 = vmatprep.subr.mxu0 0.0
        %288 = vmatpush1.msra.mxu0 0.0
        %289 = vmatprep.subr.mxu0 0.0
        %290 = vmatpush1.msra.mxu0 %v198
        %291 = vmatprep.subr.mxu0 0.0
        %292 = vmatpush1.msra.mxu0 %v196
        %293 = vmatprep.subr.mxu0 0.0
        %294 = vmatpush1.msra.mxu0 %v194
        %295 = vmatprep.subr.mxu0 0.0
        %296 = vmatpush1.msra.mxu0 %v192
        %297 = vmatprep.subr.mxu0 0.0
        %298 = vmatpush2.msra.mxu0 0.0
        %299 = vmatprep.subr.mxu0 0.0
        %300 = vmatpush2.msra.mxu0 0.0
        %301 = vmatprep.subr.mxu0 0.0
        %302 = vmatpush2.msra.mxu0 0.0
        %303 = vmatprep.subr.mxu0 0.0
        %304 = vmatpush2.msra.mxu0 0.0
        %305 = vmatprep.subr.mxu0 0.0
        %306 = vmatpush2.msra.mxu0 0.0
        %307 = vmatprep.subr.mxu0 0.0
        %308 = vmatpush2.msra.mxu0 0.0
        %309 = vmatprep.subr.mxu0 0.0
        %310 = vmatpush2.msra.mxu0 0.0
        %311 = vmatprep.subr.mxu0 0.0
        %312 = vmatpush2.msra.mxu0 0.0
        %313 = vmatprep.subr.mxu0 0.0
        %314 = vmatpush2.msra.mxu0 0.0
        %315 = vmatprep.subr.mxu0 0.0
        %316 = vmatpush2.msra.mxu0 0.0
        %317 = vmatprep.subr.mxu0 0.0
        %318 = vmatpush2.msra.mxu0 0.0
        %319 = vmatprep.subr.mxu0 0.0
        %320 = vmatpush2.msra.mxu0 0.0
        %321 = vmatprep.subr.mxu0 0.0
        %322 = vmatpush2.msra.mxu0 0.0
        %323 = vmatprep.subr.mxu0 0.0
        %324 = vmatpush2.msra.mxu0 0.0
        %325 = vmatprep.subr.mxu0 0.0
        %326 = vmatpush2.msra.mxu0 0.0
        %327 = vmatprep.subr.mxu0 0.0
        %328 = vmatpush2.msra.mxu0 0.0
        %329 = vmatprep.mubr.f32.mxu0 0.0
        %330 = vmatmul.mubr.f32.gmra.mxu0 %v254
        %v331 = vpop.f32.mrf.mxu0
        %v332 = vadd.f32 0.0, %v331
        %v333 = vpop.f32.mrf.mxu0
        %334 = vmatprep.mubr.f32.mxu0 0.0
        %335 = vmatmul.mubr.f32.gmra.mxu0 %v257
        %v336 = vpop.f32.mrf.mxu0
        %v337 = vadd.f32 0.0, %v336
        %v338 = vpop.f32.mrf.mxu0
        %339 = vmatprep.mubr.f32.mxu0 0.0
        %340 = vmatmul.mubr.f32.gmra.mxu0 %v260
        %v341 = vpop.f32.mrf.mxu0
        %v342 = vadd.f32 0.0, %v341
        %v343 = vpop.f32.mrf.mxu0
        %344 = vmatprep.mubr.f32.mxu0 0.0
        %345 = vmatmul.mubr.f32.gmra.mxu0 %v263
        %v346 = vpop.f32.mrf.mxu0
        %v347 = vadd.f32 0.0, %v346
        %v348 = vpop.f32.mrf.mxu0
        %349 = vdwg.mxu0
        %v350 = vxor.u32 %v332, 2147483648
        %v351 = vxor.u32 %v337, 2147483648
        %v352 = vxor.u32 %v342, 2147483648
        %v353 = vxor.u32 %v347, 2147483648
        %v354 = vmul.f32 %v350, 1.442695
        %v355 = vpow.pop %v354
        %v356 = vmul.f32 %v351, 1.442695
        %v357 = vpow.pop %v356
        %v358 = vmul.f32 %v352, 1.442695
        %v359 = vpow.pop %v358
        %v360 = vmul.f32 %v353, 1.442695
        %v361 = vpow.pop %v360
        %v362 = vadd.f32 %v355, 1.0
        %v363 = vadd.f32 %v357, 1.0
        %v364 = vadd.f32 %v359, 1.0
        %v365 = vadd.f32 %v361, 1.0
        %v366 = vrcp.pop %v362
        %v367 = vmul.f32 1.0, %v366
        %v368 = vrcp.pop %v363
        %v369 = vmul.f32 1.0, %v368
        %v370 = vrcp.pop %v364
        %v371 = vmul.f32 1.0, %v370
        %v372 = vrcp.pop %v365
        %v373 = vmul.f32 1.0, %v372
        %375 = vset.pattern.permute.xlu0 0
        %376 = vperm.xlu0 %375, %v367
        %v377 = vpop.permute.xlu0 %376
        %380 = vset.pattern.permute.xlu0 0
        %381 = vperm.xlu0 %380, %v369
        %v382 = vpop.permute.xlu0 %381
        %385 = vset.pattern.permute.xlu0 0
        %386 = vperm.xlu0 %385, %v371
        %v387 = vpop.permute.xlu0 %386
        %390 = vset.pattern.permute.xlu0 0
        %391 = vperm.xlu0 %390, %v373
        %v392 = vpop.permute.xlu0 %391
        %v394 = vmul.f32 %v174, %v377
        %v395 = vmul.f32 %v175, %v382
        %v396 = vmul.f32 %v176, %v387
        %v397 = vmul.f32 %v177, %v392
        %398 = vst [vmem:[%s173] sm:$0xff] %v394
        %399 = vst [vmem:[%s173 + $0x10] sm:$0xff] %v395
        %400 = vst [vmem:[%s173 + $0x20] sm:$0xff] %v396
        %401 = vst [vmem:[%s173 + $0x30] sm:$0xff] %v397
        %v402 = vld [vmem:[%s182] sm:$0xff]
        %v403 = vld [vmem:[%s182 + $0x10] sm:$0xff]
        %v404 = vld [vmem:[%s182 + $0x20] sm:$0xff]
        %v405 = vld [vmem:[%s182 + $0x30] sm:$0xff]
        %v406 = vmul.f32 %v402, %v377
        %v407 = vmul.f32 %v403, %v382
        %v408 = vmul.f32 %v404, %v387
        %v409 = vmul.f32 %v405, %v392
        %s410 = scalar_lea.vmem %s173, 8 [#allocation7]
        %411 = vst [vmem:[%s410] sm:$0xff] %v406
        %412 = vst [vmem:[%s410 + $0x10] sm:$0xff] %v407
        %413 = vst [vmem:[%s410 + $0x20] sm:$0xff] %v408
        %414 = vst [vmem:[%s410 + $0x30] sm:$0xff] %v409
        %s415 = sand.u32 %s75, 1
        %s416 = scalar_lea.sflag [#allocation4], %s415
        %s417 = sand.u32 %s75, 1
        %s418 = smul.addr %s417, 64
        %s419 = scalar_lea.vmem [#allocation7], %s418
        // Predicated region
        $region37: #{tpu_custom_call.1} parent=27 // pred_check
          %p420 = pneg %p85
        $region38: #{tpu_custom_call.1} parent=27 // pred_check_branch
          %422 = sbr.rel (%p420) target = $region40
        $region39: #{tpu_custom_call.1} parent=27 // pred_region
          %s424 = ssub.s32 1024, 1024
          %425 = vsyncadd %s416, %s424
          %s426 = smul.addr %s20, 8
          %s427 = smul.addr %s426, 128
          %s428 = scalar_lea.hbm %s2, %s427
          %s429 = sshll.u32 %s419, 4
          %s430 = int_to_ptr.vmem [resolvable:$true] %s429
          %435 = dma.vmem_to_hbm [thread:$0]  %s430, 1024, %s428, %s416, 256, 256, 16
        $region40: #{tpu_custom_call.1} parent=27 // pred_fallthru
          _
      $region28: #{tpu_custom_call.1} parent=5 // pred_fallthru
        _
      %p436 = scmp.le.s32.totalorder 2, %s15
      // Predicated region
      $region41: #{tpu_custom_call.1} parent=5 // pred_check
        %p437 = pneg %p436
      $region42: #{tpu_custom_call.1} parent=5 // pred_check_branch
        %439 = sbr.rel (%p437) target = $region44
      $region43: #{tpu_custom_call.1} parent=5 // pred_region
        %s440 = ssub.s32 %s15, 2
        // Predicated region
        $region45: #{tpu_custom_call.1} parent=43 // pred_check
          %p441 = pneg %p91
        $region46: #{tpu_custom_call.1} parent=43 // pred_check_branch
          %443 = sbr.rel (%p441) target = $region48
        $region47: #{tpu_custom_call.1} parent=43 // pred_region
          %s444 = sand.u32 %s76, 1
          %s445 = scalar_lea.sflag [#allocation4], %s444
          %s446 = sand.u32 %s76, 1
          %s447 = smul.addr %s446, 64
          %s448 = scalar_lea.vmem [#allocation7], %s447
          %449 = dma.done %s445, 1024
        $region48: #{tpu_custom_call.1} parent=43 // pred_fallthru
          _
      $region44: #{tpu_custom_call.1} parent=5 // pred_fallthru
        _
    $region6: #{tpu_custom_call.1} parent=1 // loop_footer
      %s19 = sadd.s32 1, %s15
    $region7: #{tpu_custom_call.1} parent=1 // loop_footer_branch
      %14 = sbr.rel target = $region3
    $region8: #{tpu_custom_call.1} parent=1 // loop_exit
      _
    %450 = vsyncpa [#allocation3], 1
    %s451 = scalar_lea.sflag [#allocation3], 1
    %452 = vsyncpa %s451, 1
    %453 = vsyncpa [#allocation4], 1
    %s454 = scalar_lea.sflag [#allocation4], 1
    %455 = vsyncpa %s454, 1
    %456 = vsyncpa [#allocation5], 1
    %s457 = scalar_lea.sflag [#allocation5], 1
    %458 = vsyncpa %s457, 1

</llo_original>
